<compile_context>
chip_gen: v6e
topology: v6e:2x2x1
jax: 0.10.0
libtpu: 0.0.40
codegen_flags: <defaults>
</compile_context>

<pallas_src>
import jax
import jax.numpy as jnp
from jax.experimental import pallas as pl
from jax.experimental.pallas import tpu as pltpu

_LANE = 128
_SUBLANE = 8


def global_attention_kernel(inp_ref, ctx_ref, w_in_ref, w_out_c_ref, w_out_x_ref,
                            out_ref, attn_ref):
    # inp_ref:     (TB, D)          ctx_ref:     (TB, L, D)
    # w_in_ref:    (D, D)   = W_in^T
    # w_out_c_ref: (D, Dp)  = W_out[:, :D]^T    w_out_x_ref: (D, Dp) = W_out[:, D:]^T
    # out_ref:     (TB, Dp)         attn_ref:    (TB, L)
    x = inp_ref[...]                                            # (TB, D)
    ctx = ctx_ref[...]                                          # (TB, L, D)

    # ---- linear_in: target = x @ W_in^T  (MXU, f32 accumulate) ----
    target = jnp.dot(x, w_in_ref[...],
                     preferred_element_type=jnp.float32)        # (TB, D) f32

    # ---- attention scores: VPU broadcast-multiply + lane reduction over D ----
    # (per-batch M=1 MXU matmuls would waste nearly the whole systolic array)
    scores = jnp.sum(ctx * target[:, None, :], axis=-1)         # (TB, L) f32

    # TODO(synk): applyMask / masked_fill_(-inf) path not implemented (mask is
    #             None in this module's default forward); it is mandatory
    #             before padding/tiling L for lane-dense attn stores.

    # ---- softmax over source length ----
    m = jnp.max(scores, axis=-1, keepdims=True)
    e = jnp.exp(scores - m)
    denom = jnp.sum(e, axis=-1, keepdims=True)
    # Exact reciprocal: approx=True (EUP vrcp) would break the 1e-5 tolerance.
    attn = e * pl.reciprocal(denom, approx=False)               # (TB, L) f32
    attn_ref[...] = attn.astype(attn_ref.dtype)

    # ---- weighted context: VPU broadcast-multiply + sublane reduction over L ----
    wctx = jnp.sum(ctx * attn[:, :, None], axis=1)              # (TB, D) f32

    # ---- linear_out: two K=D MXU matmuls + VPU add  (== concat(wctx, x) @ W_out^T) ----
    out = jnp.dot(wctx, w_out_c_ref[...], preferred_element_type=jnp.float32)
    out = out + jnp.dot(x, w_out_x_ref[...], preferred_element_type=jnp.float32)
    out_ref[...] = jnp.tanh(out).astype(out_ref.dtype)


def _choose_batch_tile(B, L, D, D_out_pad, in_itemsize, out_itemsize, vmem_cap):
    """Largest batch tile whose (double-buffered) blocks + f32 working set fit
    a conservative fraction of this generation's VMEM, while keeping >=4 grid
    steps for large batches (v7x has 2 TCs on the 'parallel' axis and
    double-buffering needs multiple steps to overlap the ctx DMA)."""
    ctx_row = L * max(D, _LANE) * in_itemsize
    inp_row = max(D, _LANE) * in_itemsize
    out_row = max(D_out_pad, _LANE) * out_itemsize
    attn_row = max(L, _LANE) * out_itemsize
    work_row = 2 * L * max(D, _LANE) * 4          # f32 broadcast-multiply temporaries
    per_row = 2 * (ctx_row + inp_row + out_row + attn_row) + work_row

    budget = int(vmem_cap * 0.45)
    tb = max(_SUBLANE, (budget // max(1, per_row) // _SUBLANE) * _SUBLANE)
    tb = min(tb, 2048)
    # TODO(synk): if even an 8-row ctx tile exceeds the budget (very long L),
    #             add a second 'arbitrary' grid axis over L with online softmax.
    if B >= 4 * _SUBLANE:
        # Cap tile so the grid has ~4+ steps (megacore split + pipelining).
        tb_steps = (((B + 3) // 4 + _SUBLANE - 1) // _SUBLANE) * _SUBLANE
        tb = max(_SUBLANE, min(tb, tb_steps))
    else:
        tb = min(tb, B)                            # tiny batch: single block == B
    return tb


@jax.jit
def global_attention(inp, ctx, w_in, w_out):
    """
    inp:   (B, D)
    ctx:   (B, L, D)
    w_in:  (D, D)        PyTorch nn.Linear weight layout (out, in)
    w_out: (D_out, 2*D)  PyTorch nn.Linear weight layout (out, in)
    returns (contextOutput (B, D_out), attn (B, L))
    """
    B, D = inp.shape
    _, L, _ = ctx.shape
    D_out = w_out.shape[0]

    # Lane-dense contextOutput stores: zero-pad W_out^T columns to a multiple
    # of 128 (exact; padded columns produce tanh(0)=0 and are sliced off).
    D_out_pad = ((D_out + _LANE - 1) // _LANE) * _LANE

    # Weight transposes / splits are glue; under jit they fold into the graph.
    w_in_t = w_in.T                                # (D, D)
    w_out_c = w_out[:, :D].T                       # (D, D_out)  multiplies wctx
    w_out_x = w_out[:, D:].T                       # (D, D_out)  multiplies input
    if D_out_pad != D_out:
        pad = ((0, 0), (0, D_out_pad - D_out))
        w_out_c = jnp.pad(w_out_c, pad)
        w_out_x = jnp.pad(w_out_x, pad)

    try:
        vmem_cap = int(pltpu.get_tpu_info().vmem_capacity_bytes)
    except Exception:
        vmem_cap = 64 * 1024 * 1024                # conservative (v7x per-core VMEM)

    in_isz = jnp.dtype(ctx.dtype).itemsize
    out_isz = jnp.dtype(inp.dtype).itemsize
    TB = _choose_batch_tile(B, L, D, D_out_pad, in_isz, out_isz, vmem_cap)
    grid = (pl.cdiv(B, TB),)

    # ~90% of this generation's VMEM (100 MiB cap for v5e/v6e, ~57 MiB on v7x).
    vmem_limit = min(int(vmem_cap * 0.9), 100 * 1024 * 1024)

    grid_spec = pltpu.PrefetchScalarGridSpec(
        num_scalar_prefetch=0,
        grid=grid,
        in_specs=[
            pl.BlockSpec((TB, D), lambda i: (i, 0)),           # input   (batch-tiled)
            pl.BlockSpec((TB, L, D), lambda i: (i, 0, 0)),     # context (batch-tiled)
            pl.BlockSpec((D, D), lambda i: (0, 0)),            # W_in^T       (resident)
            pl.BlockSpec((D, D_out_pad), lambda i: (0, 0)),    # W_out^T[:D]  (resident)
            pl.BlockSpec((D, D_out_pad), lambda i: (0, 0)),    # W_out^T[D:]  (resident)
        ],
        out_specs=[
            pl.BlockSpec((TB, D_out_pad), lambda i: (i, 0)),   # contextOutput (lane-dense)
            pl.BlockSpec((TB, L), lambda i: (i, 0)),           # attn
        ],
    )

    out_shapes = (
        jax.ShapeDtypeStruct((B, D_out_pad), inp.dtype),
        jax.ShapeDtypeStruct((B, L), inp.dtype),
    )

    out, attn = pl.pallas_call(
        global_attention_kernel,
        out_shape=out_shapes,
        grid_spec=grid_spec,
        compiler_params=pltpu.CompilerParams(
            dimension_semantics=("parallel",),
            vmem_limit_bytes=vmem_limit,
        ),
    )(inp, ctx, w_in_t, w_out_c, w_out_x)

    if D_out_pad != D_out:
        out = out[:, :D_out]
    return out, attn


def reference(inp, ctx, w_in, w_out):
    target = inp @ w_in.T                                  # (B, D)
    scores = jnp.einsum('bld,bd->bl', ctx, target)         # (B, L)
    attn = jax.nn.softmax(scores, axis=1)
    wctx = jnp.einsum('bl,bld->bd', attn, ctx)             # (B, D)
    combined = jnp.concatenate([wctx, inp], axis=1)        # (B, 2D)
    out = jnp.tanh(combined @ w_out.T)
    return out, attn


if __name__ == "__main__":
    B, L, D, D_out = 2, 8, 32, 32

    key = jax.random.PRNGKey(0)
    k1, k2, k3, k4 = jax.random.split(key, 4)
    inp = jax.random.normal(k1, (B, D), dtype=jnp.float32)
    ctx = jax.random.normal(k2, (B, L, D), dtype=jnp.float32)
    # Deterministic parameter init (nn.Linear default-ish scale).
    w_in = jax.random.uniform(k3, (D, D), minval=-1.0 / D ** 0.5,
                              maxval=1.0 / D ** 0.5, dtype=jnp.float32)
    w_out = jax.random.uniform(k4, (D_out, 2 * D), minval=-1.0 / (2 * D) ** 0.5,
                               maxval=1.0 / (2 * D) ** 0.5, dtype=jnp.float32)

    out, attn = global_attention(inp, ctx, w_in, w_out)
    jax.block_until_ready((out, attn))

    ref_out, ref_attn = reference(inp, ctx, w_in, w_out)
    assert jnp.allclose(out, ref_out, atol=1e-5, rtol=1e-5), \
        float(jnp.max(jnp.abs(out - ref_out)))
    assert jnp.allclose(attn, ref_attn, atol=1e-5, rtol=1e-5), \
        float(jnp.max(jnp.abs(attn - ref_attn)))

    print("KERNEL_OK")
</pallas_src>

<mosaic_0001>
module attributes {stable_mosaic.version = 11 : i64} {
  func.func @global_attention_kernel(%arg0: i32, %arg1: memref<2x32xf32, #tpu.memory_space<vmem>>, %arg2: memref<2x8x32xf32, #tpu.memory_space<vmem>>, %arg3: memref<32x32xf32, #tpu.memory_space<vmem>>, %arg4: memref<32x128xf32, #tpu.memory_space<vmem>>, %arg5: memref<32x128xf32, #tpu.memory_space<vmem>>, %arg6: memref<2x128xf32, #tpu.memory_space<vmem>>, %arg7: memref<2x8xf32, #tpu.memory_space<vmem>>) attributes {dimension_semantics = [#tpu.dimension_semantics<parallel>], iteration_bounds = array<i64: 1>, scalar_prefetch = 0 : i64, scratch_operands = 0 : i64, tpu.core_type = #tpu.core_type<tc>, window_params = [{transform_indices = @transform_0, window_bounds = array<i64: 2, 32>}, {transform_indices = @transform_1, window_bounds = array<i64: 2, 8, 32>}, {pipeline_mode = #tpu.pipeline_mode<synchronous>, transform_indices = @transform_2, window_bounds = array<i64: 32, 32>}, {pipeline_mode = #tpu.pipeline_mode<synchronous>, transform_indices = @transform_3, window_bounds = array<i64: 32, 128>}, {pipeline_mode = #tpu.pipeline_mode<synchronous>, transform_indices = @transform_4, window_bounds = array<i64: 32, 128>}, {transform_indices = @transform_5, window_bounds = array<i64: 2, 128>}, {transform_indices = @transform_6, window_bounds = array<i64: 2, 8>}]} {
    %c0 = arith.constant 0 : index
    %c0_0 = arith.constant 0 : index
    %0 = vector.load %arg1[%c0, %c0_0] : memref<2x32xf32, #tpu.memory_space<vmem>>, vector<2x32xf32>
    %c0_1 = arith.constant 0 : index
    %c0_2 = arith.constant 0 : index
    %c0_3 = arith.constant 0 : index
    %1 = vector.load %arg2[%c0_1, %c0_2, %c0_3] : memref<2x8x32xf32, #tpu.memory_space<vmem>>, vector<2x8x32xf32>
    %c0_4 = arith.constant 0 : index
    %c0_5 = arith.constant 0 : index
    %2 = vector.load %arg3[%c0_4, %c0_5] : memref<32x32xf32, #tpu.memory_space<vmem>>, vector<32x32xf32>
    %cst = arith.constant dense<0.000000e+00> : vector<2x32xf32>
    %3 = tpu.matmul %0, %2, %cst {dimension_numbers = #tpu.dot_dimension_numbers<[1], [0], [0], [1], [0, 0, 1, 1], [], []>} : vector<2x32xf32>, vector<32x32xf32>, vector<2x32xf32> -> vector<2x32xf32>
    %4 = vector.shape_cast %3 : vector<2x32xf32> to vector<2x1x32xf32>
    %5 = vector.broadcast %4 : vector<2x1x32xf32> to vector<2x8x32xf32>
    %6 = arith.mulf %1, %5 : vector<2x8x32xf32>
    %cst_6 = arith.constant dense<0.000000e+00> : vector<2x8xf32>
    %7 = vector.multi_reduction <add>, %6, %cst_6 [2] : vector<2x8x32xf32> to vector<2x8xf32>
    %cst_7 = arith.constant dense<0xFF800000> : vector<2xf32>
    %8 = vector.multi_reduction <maximumf>, %7, %cst_7 [1] : vector<2x8xf32> to vector<2xf32>
    %9 = vector.shape_cast %8 : vector<2xf32> to vector<2x1xf32>
    %10 = vector.broadcast %9 : vector<2x1xf32> to vector<2x8xf32>
    %11 = arith.subf %7, %10 : vector<2x8xf32>
    %12 = math.exp %11 : vector<2x8xf32>
    %cst_8 = arith.constant dense<0.000000e+00> : vector<2xf32>
    %13 = vector.multi_reduction <add>, %12, %cst_8 [1] : vector<2x8xf32> to vector<2xf32>
    %14 = vector.shape_cast %13 : vector<2xf32> to vector<2x1xf32>
    %15 = tpu.reciprocal %14 : vector<2x1xf32> -> vector<2x1xf32>
    %16 = vector.broadcast %15 : vector<2x1xf32> to vector<2x8xf32>
    %17 = arith.mulf %12, %16 : vector<2x8xf32>
    %c0_9 = arith.constant 0 : index
    %c0_10 = arith.constant 0 : index
    %18 = vector.load %arg7[%c0_9, %c0_10] : memref<2x8xf32, #tpu.memory_space<vmem>>, vector<2x8xf32>
    tpu.vector_store %arg7[%c0_9, %c0_10], %17 {strides = array<i32>} : memref<2x8xf32, #tpu.memory_space<vmem>>, vector<2x8xf32>,
    %19 = vector.shape_cast %17 : vector<2x8xf32> to vector<2x8x1xf32>
    %20 = vector.broadcast %19 : vector<2x8x1xf32> to vector<2x8x32xf32>
    %21 = arith.mulf %1, %20 : vector<2x8x32xf32>
    %cst_11 = arith.constant dense<0.000000e+00> : vector<2x32xf32>
    %22 = vector.multi_reduction <add>, %21, %cst_11 [1] : vector<2x8x32xf32> to vector<2x32xf32>
    %c0_12 = arith.constant 0 : index
    %c0_13 = arith.constant 0 : index
    %23 = vector.load %arg4[%c0_12, %c0_13] : memref<32x128xf32, #tpu.memory_space<vmem>>, vector<32x128xf32>
    %cst_14 = arith.constant dense<0.000000e+00> : vector<2x128xf32>
    %24 = tpu.matmul %22, %23, %cst_14 {dimension_numbers = #tpu.dot_dimension_numbers<[1], [0], [0], [1], [0, 0, 1, 1], [], []>} : vector<2x32xf32>, vector<32x128xf32>, vector<2x128xf32> -> vector<2x128xf32>
    %c0_15 = arith.constant 0 : index
    %c0_16 = arith.constant 0 : index
    %25 = vector.load %arg5[%c0_15, %c0_16] : memref<32x128xf32, #tpu.memory_space<vmem>>, vector<32x128xf32>
    %cst_17 = arith.constant dense<0.000000e+00> : vector<2x128xf32>
    %26 = tpu.matmul %0, %25, %cst_17 {dimension_numbers = #tpu.dot_dimension_numbers<[1], [0], [0], [1], [0, 0, 1, 1], [], []>} : vector<2x32xf32>, vector<32x128xf32>, vector<2x128xf32> -> vector<2x128xf32>
    %27 = arith.addf %24, %26 : vector<2x128xf32>
    %28 = math.tanh %27 : vector<2x128xf32>
    %c0_18 = arith.constant 0 : index
    %c0_19 = arith.constant 0 : index
    %29 = vector.load %arg6[%c0_18, %c0_19] : memref<2x128xf32, #tpu.memory_space<vmem>>, vector<2x128xf32>
    tpu.vector_store %arg6[%c0_18, %c0_19], %28 {strides = array<i32>} : memref<2x128xf32, #tpu.memory_space<vmem>>, vector<2x128xf32>,
    return
  }
  func.func @transform_0(%arg0: i32) -> (i32, i32) {
    %c0_i32 = arith.constant 0 : i32
    %c0_i32_0 = arith.constant 0 : i32
    return %arg0, %c0_i32 : i32, i32
  }
  func.func @transform_1(%arg0: i32) -> (i32, i32, i32) {
    %c0_i32 = arith.constant 0 : i32
    %c0_i32_0 = arith.constant 0 : i32
    %c0_i32_1 = arith.constant 0 : i32
    return %arg0, %c0_i32, %c0_i32_0 : i32, i32, i32
  }
  func.func @transform_2(%arg0: i32) -> (i32, i32) {
    %c0_i32 = arith.constant 0 : i32
    %c0_i32_0 = arith.constant 0 : i32
    %c0_i32_1 = arith.constant 0 : i32
    return %c0_i32, %c0_i32_0 : i32, i32
  }
  func.func @transform_3(%arg0: i32) -> (i32, i32) {
    %c0_i32 = arith.constant 0 : i32
    %c0_i32_0 = arith.constant 0 : i32
    %c0_i32_1 = arith.constant 0 : i32
    return %c0_i32, %c0_i32_0 : i32, i32
  }
  func.func @transform_4(%arg0: i32) -> (i32, i32) {
    %c0_i32 = arith.constant 0 : i32
    %c0_i32_0 = arith.constant 0 : i32
    %c0_i32_1 = arith.constant 0 : i32
    return %c0_i32, %c0_i32_0 : i32, i32
  }
  func.func @transform_5(%arg0: i32) -> (i32, i32) {
    %c0_i32 = arith.constant 0 : i32
    %c0_i32_0 = arith.constant 0 : i32
    return %arg0, %c0_i32 : i32, i32
  }
  func.func @transform_6(%arg0: i32) -> (i32, i32) {
    %c0_i32 = arith.constant 0 : i32
    %c0_i32_0 = arith.constant 0 : i32
    return %arg0, %c0_i32 : i32, i32
  }
}

</mosaic_0001>

<llo_original>
// kernel: global_attention.1
$region0: #{global_attention.1}
  #allocation0 [shape = 'u32[]', space=smem, size = 0x4, offset = 0x4, fixed_abs, tag = 'smem constant byte address 0x4 - core index']
  #allocation1 [shape = 'u32[144,128]{1,0:T(1,128)}', space=vmem, size = 0x12000, scoped, tag = 'internal scratch']
  %s0 = inlined_call_operand.vmem [shape: f32[2,32], index: 0, kind: input, shape index: {}]
  %s1 = inlined_call_operand.vmem [shape: f32[2,8,32], index: 1, kind: input, shape index: {}]
  %s2 = inlined_call_operand.vmem [shape: f32[32,32], index: 2, kind: input, shape index: {}]
  %s3 = inlined_call_operand.vmem [shape: f32[32,128], index: 3, kind: input, shape index: {}]
  %s4 = inlined_call_operand.vmem [shape: f32[32,128], index: 4, kind: input, shape index: {}]
  %s5 = inlined_call_operand.hbm [shape: f32[2,128], index: 5, kind: output, shape index: {0}]
  %s6 = inlined_call_operand.hbm [shape: f32[2,8], index: 6, kind: output, shape index: {1}]
  %7 = xla_tuple %s5, %s6
  %s8 = sld [smem:[#allocation0]]
  $region38: #{global_attention.1} parent=0
    _
  %s10 = ssub.s32 1, %s8
  %s11 = scalar_select 0, %s10, %s8
  $region1: #{global_attention.1} parent=0
    #allocation2 [shape = 'u8[1024]{0}', space=vmem, size = 0x400, scoped, tag = 'output window, operand 0, single buffered']
    #allocation3 [shape = 's32[1]{0}', space=sflag, size = 0x4, scoped, tag = 'scoped memory for global_attention.1']
    #allocation4 [shape = 'u8[1024]{0}', space=vmem, size = 0x400, scoped, tag = 'output window, operand 1, single buffered']
    #allocation5 [shape = 's32[1]{0}', space=sflag, size = 0x4, scoped, tag = 'scoped memory for global_attention.1']
    %12 = vsyncpa [#allocation3], 0
    %13 = vsyncpa [#allocation5], 0
    // Predicated region
    $region2: #{global_attention.1} parent=1 // pred_check
      _
    $region3: #{global_attention.1} parent=1 // pred_check_branch
      %15 = sbr.rel (0) target = $region5
    $region4: #{global_attention.1} parent=1 // pred_region
      _
    $region5: #{global_attention.1} parent=1 // pred_fallthru
      _
    // Predicated region
    $region6: #{global_attention.1} parent=1 // pred_check
      _
    $region7: #{global_attention.1} parent=1 // pred_check_branch
      %17 = sbr.rel (0) target = $region9
    $region8: #{global_attention.1} parent=1 // pred_region
      _
    $region9: #{global_attention.1} parent=1 // pred_fallthru
      _
    // Predicated region
    $region10: #{global_attention.1} parent=1 // pred_check
      _
    $region11: #{global_attention.1} parent=1 // pred_check_branch
      %19 = sbr.rel (0) target = $region13
    $region12: #{global_attention.1} parent=1 // pred_region
      _
    $region13: #{global_attention.1} parent=1 // pred_fallthru
      _
    // Predicated region
    $region14: #{global_attention.1} parent=1 // pred_check
      _
    $region15: #{global_attention.1} parent=1 // pred_check_branch
      %21 = sbr.rel (0) target = $region17
    $region16: #{global_attention.1} parent=1 // pred_region
      _
    $region17: #{global_attention.1} parent=1 // pred_fallthru
      _
    // Predicated region
    $region18: #{global_attention.1} parent=1 // pred_check
      _
    $region19: #{global_attention.1} parent=1 // pred_check_branch
      %23 = sbr.rel (0) target = $region21
    $region20: #{global_attention.1} parent=1 // pred_region
      _
    $region21: #{global_attention.1} parent=1 // pred_fallthru
      _
    %v24 = vld [vmem:[%s0] sm:$0x3]
    %v25 = vld [vmem:[%s1] sm:$0xff]
    %v26 = vld [vmem:[%s1 + $0x8] sm:$0xff]
    %v27 = vld [vmem:[%s2] sm:$0xff]
    %v28 = vld [vmem:[%s2 + $0x8] sm:$0xff]
    %v29 = vld [vmem:[%s2 + $0x10] sm:$0xff]
    %v30 = vld [vmem:[%s2 + $0x18] sm:$0xff]
    %vm31 = vcmask 261120
    %v33 = vsel %vm31, %v24, 0
    %35 = vmatprep.subr.mxu0 0.0
    %36 = vmatpush1.msra.mxu0 0.0
    %37 = vmatprep.subr.mxu0 0.0
    %38 = vmatpush1.msra.mxu0 0.0
    %39 = vmatprep.subr.mxu0 0.0
    %40 = vmatpush1.msra.mxu0 0.0
    %41 = vmatprep.subr.mxu0 0.0
    %42 = vmatpush1.msra.mxu0 0.0
    %43 = vmatprep.subr.mxu0 0.0
    %44 = vmatpush1.msra.mxu0 0.0
    %45 = vmatprep.subr.mxu0 0.0
    %46 = vmatpush1.msra.mxu0 0.0
    %47 = vmatprep.subr.mxu0 0.0
    %48 = vmatpush1.msra.mxu0 0.0
    %49 = vmatprep.subr.mxu0 0.0
    %50 = vmatpush1.msra.mxu0 0.0
    %51 = vmatprep.subr.mxu0 0.0
    %52 = vmatpush1.msra.mxu0 0.0
    %53 = vmatprep.subr.mxu0 0.0
    %54 = vmatpush1.msra.mxu0 0.0
    %55 = vmatprep.subr.mxu0 0.0
    %56 = vmatpush1.msra.mxu0 0.0
    %57 = vmatprep.subr.mxu0 0.0
    %58 = vmatpush1.msra.mxu0 0.0
    %59 = vmatprep.subr.mxu0 0.0
    %60 = vmatpush1.msra.mxu0 %v30
    %61 = vmatprep.subr.mxu0 0.0
    %62 = vmatpush1.msra.mxu0 %v29
    %63 = vmatprep.subr.mxu0 0.0
    %64 = vmatpush1.msra.mxu0 %v28
    %65 = vmatprep.subr.mxu0 0.0
    %66 = vmatpush1.msra.mxu0 %v27
    %67 = vmatprep.subr.mxu0 0.0
    %68 = vmatpush2.msra.mxu0 0.0
    %69 = vmatprep.subr.mxu0 0.0
    %70 = vmatpush2.msra.mxu0 0.0
    %71 = vmatprep.subr.mxu0 0.0
    %72 = vmatpush2.msra.mxu0 0.0
    %73 = vmatprep.subr.mxu0 0.0
    %74 = vmatpush2.msra.mxu0 0.0
    %75 = vmatprep.subr.mxu0 0.0
    %76 = vmatpush2.msra.mxu0 0.0
    %77 = vmatprep.subr.mxu0 0.0
    %78 = vmatpush2.msra.mxu0 0.0
    %79 = vmatprep.subr.mxu0 0.0
    %80 = vmatpush2.msra.mxu0 0.0
    %81 = vmatprep.subr.mxu0 0.0
    %82 = vmatpush2.msra.mxu0 0.0
    %83 = vmatprep.subr.mxu0 0.0
    %84 = vmatpush2.msra.mxu0 0.0
    %85 = vmatprep.subr.mxu0 0.0
    %86 = vmatpush2.msra.mxu0 0.0
    %87 = vmatprep.subr.mxu0 0.0
    %88 = vmatpush2.msra.mxu0 0.0
    %89 = vmatprep.subr.mxu0 0.0
    %90 = vmatpush2.msra.mxu0 0.0
    %91 = vmatprep.subr.mxu0 0.0
    %92 = vmatpush2.msra.mxu0 0.0
    %93 = vmatprep.subr.mxu0 0.0
    %94 = vmatpush2.msra.mxu0 0.0
    %95 = vmatprep.subr.mxu0 0.0
    %96 = vmatpush2.msra.mxu0 0.0
    %97 = vmatprep.subr.mxu0 0.0
    %98 = vmatpush2.msra.mxu0 0.0
    %99 = vmatprep.mubr.f32.mxu0 0.0
    %100 = vmatmul.mubr.f32.gmra.mxu0 %v33
    %v101 = vpop.f32.mrf.mxu0
    %v102 = vadd.f32 0.0, %v101
    %v103 = vpop.f32.mrf.mxu0
    %104 = vdwg.mxu0
    %v107 = vunpack.c.l.s4 1966171168
    %v108 = vunpack.c.0.s8 %v107
    %v109 = vlaneseq
    %v110 = vshrl.u32 %v109, 7
    %v111 = vsub.s32 %v108, %v110
    %v112 = vrot.slane %v102, %v111
    %v113 = vcombine.high %v112, %v112
    %v115 = vunpack.c.l.s4 1966171168
    %v116 = vunpack.c.0.s8 %v115
    %v117 = vlaneseq
    %v118 = vshrl.u32 %v117, 7
    %v119 = vsub.s32 %v116, %v118
    %v120 = vrot.slane %v112, %v119
    %v122 = vunpack.c.l.s4 1966171168
    %v123 = vunpack.c.0.s8 %v122
    %v124 = vlaneseq
    %v125 = vshrl.u32 %v124, 7
    %v126 = vsub.s32 %v123, %v125
    %v127 = vrot.slane %v113, %v126
    %v128 = vlaneseq
    %v129 = vshrl.u32 %v128, 7
    %v130 = vsub.s32 0, %v129
    %v131 = vrot.slane %v120, %v130
    %v132 = vlaneseq
    %v133 = vshrl.u32 %v132, 7
    %v134 = vsub.s32 0, %v133
    %v135 = vrot.slane %v127, %v134
    %v138 = vmul.f32 %v25, %v131
    %v139 = vmul.f32 %v26, %v135
    %v140 = vsel %vm31, %v138, 0.0
    %141 = vadd.xlane.f32.xlu0 %v140
    %v142 = vpop.xlane.xlu0 %141
    %v143 = vsel %vm31, %v139, 0.0
    %144 = vadd.xlane.f32.xlu0 %v143
    %v145 = vpop.xlane.xlu0 %144
    %v148 = vlaneseq
    %v149 = vand.u32 %v148, 127
    %v150 = vlaneseq
    %v151 = vshrl.u32 %v150, 7
    %v152 = vsub.s32 %v149, %v151
    %v153 = vrot.slane %v142, %v152
    %v154 = vlaneseq
    %v155 = vshrl.u32 %v154, 7
    %v156 = vsub.s32 %v149, %v155
    %v157 = vrot.slane %v145, %v156
    %vm158 = vcmask 1041409
    %v159 = vsel %vm158, %v157, %v153
    %vm161 = vcmask 58368
    %v162 = vsel %vm161, %v159, -inf
    %163 = vmax.xlane.f32.xlu0 %v162
    %v164 = vpop.xlane.xlu0 %163
    %v166 = vlaneseq
    %v167 = vshrl.u32 %v166, 7
    %v168 = vsub.s32 0, %v167
    %v169 = vrot.slane %v164, %v168
    %v170 = vlaneseq
    %v171 = vshrl.u32 %v170, 7
    %v172 = vsub.s32 1, %v171
    %v173 = vrot.slane %v164, %v172
    %v176 = vsub.f32 %v142, %v169
    %v177 = vsub.f32 %v145, %v173
    %v178 = vmul.f32 %v176, 1.442695
    %v179 = vpow.pop %v178
    %v180 = vmul.f32 %v177, 1.442695
    %v181 = vpow.pop %v180
    %184 = vset.pattern.permute.xlu0 0
    %185 = vperm.xlu0 %184, %v179
    %v186 = vpop.permute.xlu0 %185
    %187 = vset.pattern.permute.xlu0 0
    %188 = vperm.xlu0 %187, %v181
    %v189 = vpop.permute.xlu0 %188
    %v190 = vlaneseq
    %v191 = vshrl.u32 %v190, 7
    %v192 = vsub.s32 %v149, %v191
    %v193 = vrot.slane %v186, %v192
    %v194 = vlaneseq
    %v195 = vshrl.u32 %v194, 7
    %v196 = vsub.s32 %v149, %v195
    %v197 = vrot.slane %v189, %v196
    %v198 = vsel %vm158, %v197, %v193
    %v200 = vsel %vm161, %v198, 0.0
    %201 = vadd.xlane.f32.xlu0 %v200
    %v202 = vpop.xlane.xlu0 %201
    %v203 = vrcp.pop %v202
    %v205 = vlaneseq
    %v206 = vshrl.u32 %v205, 7
    %v207 = vsub.s32 0, %v206
    %v208 = vrot.slane %v203, %v207
    %v209 = vlaneseq
    %v210 = vshrl.u32 %v209, 7
    %v211 = vsub.s32 1, %v210
    %v212 = vrot.slane %v203, %v211
    %v215 = vmul.f32 %v179, %v208
    %v216 = vmul.f32 %v181, %v212
    %219 = vset.pattern.permute.xlu0 0
    %220 = vperm.xlu0 %219, %v215
    %v221 = vpop.permute.xlu0 %220
    %222 = vset.pattern.permute.xlu0 0
    %223 = vperm.xlu0 %222, %v216
    %v224 = vpop.permute.xlu0 %223
    %v225 = vlaneseq
    %v226 = vshrl.u32 %v225, 7
    %v227 = vsub.s32 %v149, %v226
    %v228 = vrot.slane %v221, %v227
    %v229 = vlaneseq
    %v230 = vshrl.u32 %v229, 7
    %v231 = vsub.s32 %v149, %v230
    %v232 = vrot.slane %v224, %v231
    %v233 = vsel %vm158, %v232, %v228
    %235 = vst.msk [vmem:[#allocation4] sm:$0x3] %vm161, %v233
    %v238 = vmul.f32 %v25, %v221
    %v239 = vmul.f32 %v26, %v224
    %v240 = vsel %vm31, %v238, 0.0
    %v241 = vrot.slane %v240, 4
    %v242 = vadd.f32 %v240, %v241
    %v243 = vrot.slane %v242, 2
    %v244 = vadd.f32 %v242, %v243
    %v245 = vrot.slane %v244, 1
    %v246 = vadd.f32 %v244, %v245
    %v247 = vsel %vm31, %v239, 0.0
    %v248 = vrot.slane %v247, 4
    %v249 = vadd.f32 %v247, %v248
    %v250 = vrot.slane %v249, 2
    %v251 = vadd.f32 %v249, %v250
    %v252 = vrot.slane %v251, 1
    %v253 = vadd.f32 %v251, %v252
    %v254 = vld [vmem:[%s3] sm:$0xff]
    %v255 = vld [vmem:[%s3 + $0x8] sm:$0xff]
    %v256 = vld [vmem:[%s3 + $0x10] sm:$0xff]
    %v257 = vld [vmem:[%s3 + $0x18] sm:$0xff]
    %v258 = vld [vmem:[%s4] sm:$0xff]
    %v259 = vld [vmem:[%s4 + $0x8] sm:$0xff]
    %v260 = vld [vmem:[%s4 + $0x10] sm:$0xff]
    %v261 = vld [vmem:[%s4 + $0x18] sm:$0xff]
    %262 = vmatprep.subr.mxu0 0.0
    %263 = vmatpush1.msra.mxu0 0.0
    %264 = vmatprep.subr.mxu0 0.0
    %265 = vmatpush1.msra.mxu0 0.0
    %266 = vmatprep.subr.mxu0 0.0
    %267 = vmatpush1.msra.mxu0 0.0
    %268 = vmatprep.subr.mxu0 0.0
    %269 = vmatpush1.msra.mxu0 0.0
    %270 = vmatprep.subr.mxu0 0.0
    %271 = vmatpush1.msra.mxu0 0.0
    %272 = vmatprep.subr.mxu0 0.0
    %273 = vmatpush1.msra.mxu0 0.0
    %274 = vmatprep.subr.mxu0 0.0
    %275 = vmatpush1.msra.mxu0 0.0
    %276 = vmatprep.subr.mxu0 0.0
    %277 = vmatpush1.msra.mxu0 0.0
    %278 = vmatprep.subr.mxu0 0.0
    %279 = vmatpush1.msra.mxu0 0.0
    %280 = vmatprep.subr.mxu0 0.0
    %281 = vmatpush1.msra.mxu0 0.0
    %282 = vmatprep.subr.mxu0 0.0
    %283 = vmatpush1.msra.mxu0 0.0
    %284 = vmatprep.subr.mxu0 0.0
    %285 = vmatpush1.msra.mxu0 0.0
    %286 = vmatprep.subr.mxu0 0.0
    %287 = vmatpush1.msra.mxu0 %v261
    %288 = vmatprep.subr.mxu0 0.0
    %289 = vmatpush1.msra.mxu0 %v260
    %290 = vmatprep.subr.mxu0 0.0
    %291 = vmatpush1.msra.mxu0 %v259
    %292 = vmatprep.subr.mxu0 0.0
    %293 = vmatpush1.msra.mxu0 %v258
    %294 = vmatprep.subr.mxu0 0.0
    %295 = vmatpush2.msra.mxu0 0.0
    %296 = vmatprep.subr.mxu0 0.0
    %297 = vmatpush2.msra.mxu0 0.0
    %298 = vmatprep.subr.mxu0 0.0
    %299 = vmatpush2.msra.mxu0 0.0
    %300 = vmatprep.subr.mxu0 0.0
    %301 = vmatpush2.msra.mxu0 0.0
    %302 = vmatprep.subr.mxu0 0.0
    %303 = vmatpush2.msra.mxu0 0.0
    %304 = vmatprep.subr.mxu0 0.0
    %305 = vmatpush2.msra.mxu0 0.0
    %306 = vmatprep.subr.mxu0 0.0
    %307 = vmatpush2.msra.mxu0 0.0
    %308 = vmatprep.subr.mxu0 0.0
    %309 = vmatpush2.msra.mxu0 0.0
    %310 = vmatprep.subr.mxu0 0.0
    %311 = vmatpush2.msra.mxu0 0.0
    %312 = vmatprep.subr.mxu0 0.0
    %313 = vmatpush2.msra.mxu0 0.0
    %314 = vmatprep.subr.mxu0 0.0
    %315 = vmatpush2.msra.mxu0 0.0
    %316 = vmatprep.subr.mxu0 0.0
    %317 = vmatpush2.msra.mxu0 0.0
    %318 = vmatprep.subr.mxu0 0.0
    %319 = vmatpush2.msra.mxu0 0.0
    %320 = vmatprep.subr.mxu0 0.0
    %321 = vmatpush2.msra.mxu0 0.0
    %322 = vmatprep.subr.mxu0 0.0
    %323 = vmatpush2.msra.mxu0 0.0
    %324 = vmatprep.subr.mxu0 0.0
    %325 = vmatpush2.msra.mxu0 0.0
    %326 = vmatprep.mubr.f32.mxu0 0.0
    %327 = vmatmul.mubr.f32.gmra.mxu0 %v33
    %v328 = vpop.f32.mrf.mxu0
    %v329 = vadd.f32 0.0, %v328
    %v330 = vpop.f32.mrf.mxu0
    %331 = vdwg.mxu0
    %v334 = vsel %vm158, %v253, %v246
    %v335 = vsel %vm31, %v334, 0
    %337 = vmatprep.subr.mxu0 0.0
    %338 = vmatpush1.msra.mxu0 0.0
    %339 = vmatprep.subr.mxu0 0.0
    %340 = vmatpush1.msra.mxu0 0.0
    %341 = vmatprep.subr.mxu0 0.0
    %342 = vmatpush1.msra.mxu0 0.0
    %343 = vmatprep.subr.mxu0 0.0
    %344 = vmatpush1.msra.mxu0 0.0
    %345 = vmatprep.subr.mxu0 0.0
    %346 = vmatpush1.msra.mxu0 0.0
    %347 = vmatprep.subr.mxu0 0.0
    %348 = vmatpush1.msra.mxu0 0.0
    %349 = vmatprep.subr.mxu0 0.0
    %350 = vmatpush1.msra.mxu0 0.0
    %351 = vmatprep.subr.mxu0 0.0
    %352 = vmatpush1.msra.mxu0 0.0
    %353 = vmatprep.subr.mxu0 0.0
    %354 = vmatpush1.msra.mxu0 0.0
    %355 = vmatprep.subr.mxu0 0.0
    %356 = vmatpush1.msra.mxu0 0.0
    %357 = vmatprep.subr.mxu0 0.0
    %358 = vmatpush1.msra.mxu0 0.0
    %359 = vmatprep.subr.mxu0 0.0
    %360 = vmatpush1.msra.mxu0 0.0
    %361 = vmatprep.subr.mxu0 0.0
    %362 = vmatpush1.msra.mxu0 %v257
    %363 = vmatprep.subr.mxu0 0.0
    %364 = vmatpush1.msra.mxu0 %v256
    %365 = vmatprep.subr.mxu0 0.0
    %366 = vmatpush1.msra.mxu0 %v255
    %367 = vmatprep.subr.mxu0 0.0
    %368 = vmatpush1.msra.mxu0 %v254
    %369 = vmatprep.subr.mxu0 0.0
    %370 = vmatpush2.msra.mxu0 0.0
    %371 = vmatprep.subr.mxu0 0.0
    %372 = vmatpush2.msra.mxu0 0.0
    %373 = vmatprep.subr.mxu0 0.0
    %374 = vmatpush2.msra.mxu0 0.0
    %375 = vmatprep.subr.mxu0 0.0
    %376 = vmatpush2.msra.mxu0 0.0
    %377 = vmatprep.subr.mxu0 0.0
    %378 = vmatpush2.msra.mxu0 0.0
    %379 = vmatprep.subr.mxu0 0.0
    %380 = vmatpush2.msra.mxu0 0.0
    %381 = vmatprep.subr.mxu0 0.0
    %382 = vmatpush2.msra.mxu0 0.0
    %383 = vmatprep.subr.mxu0 0.0
    %384 = vmatpush2.msra.mxu0 0.0
    %385 = vmatprep.subr.mxu0 0.0
    %386 = vmatpush2.msra.mxu0 0.0
    %387 = vmatprep.subr.mxu0 0.0
    %388 = vmatpush2.msra.mxu0 0.0
    %389 = vmatprep.subr.mxu0 0.0
    %390 = vmatpush2.msra.mxu0 0.0
    %391 = vmatprep.subr.mxu0 0.0
    %392 = vmatpush2.msra.mxu0 0.0
    %393 = vmatprep.subr.mxu0 0.0
    %394 = vmatpush2.msra.mxu0 0.0
    %395 = vmatprep.subr.mxu0 0.0
    %396 = vmatpush2.msra.mxu0 0.0
    %397 = vmatprep.subr.mxu0 0.0
    %398 = vmatpush2.msra.mxu0 0.0
    %399 = vmatprep.subr.mxu0 0.0
    %400 = vmatpush2.msra.mxu0 0.0
    %401 = vmatprep.mubr.f32.mxu0 0.0
    %402 = vmatmul.mubr.f32.gmra.mxu0 %v335
    %v403 = vpop.f32.mrf.mxu0
    %v404 = vadd.f32 %v329, %v403
    %v405 = vpop.f32.mrf.mxu0
    %406 = vdwg.mxu0
    %v407 = vtanh.pop %v404
    %408 = vst [vmem:[#allocation2] sm:$0x3] %v407
    // Predicated region
    $region22: #{global_attention.1} parent=1 // pred_check
      _
    $region23: #{global_attention.1} parent=1 // pred_check_branch
      %410 = sbr.rel (0) target = $region25
    $region24: #{global_attention.1} parent=1 // pred_region
      %s412 = ssub.s32 32, 32
      %413 = vsyncadd [#allocation3], %s412
      %s415 = sshll.u32 [#allocation2], 4
      %s416 = int_to_ptr.vmem [resolvable:$true] %s415
      %418 = dma.vmem_to_hbm [thread:$0]  %s416, 32, %s5, [#allocation3]
    $region25: #{global_attention.1} parent=1 // pred_fallthru
      _
    // Predicated region
    $region26: #{global_attention.1} parent=1 // pred_check
      _
    $region27: #{global_attention.1} parent=1 // pred_check_branch
      %420 = sbr.rel (0) target = $region29
    $region28: #{global_attention.1} parent=1 // pred_region
      %s422 = ssub.s32 32, 32
      %423 = vsyncadd [#allocation5], %s422
      %s425 = sshll.u32 [#allocation4], 4
      %s426 = int_to_ptr.vmem [resolvable:$true] %s425
      %428 = dma.vmem_to_hbm [thread:$0]  %s426, 32, %s6, [#allocation5]
    $region29: #{global_attention.1} parent=1 // pred_fallthru
      _
    // Predicated region
    $region30: #{global_attention.1} parent=1 // pred_check
      _
    $region31: #{global_attention.1} parent=1 // pred_check_branch
      %430 = sbr.rel (0) target = $region33
    $region32: #{global_attention.1} parent=1 // pred_region
      %431 = dma.done [#allocation3], 32
    $region33: #{global_attention.1} parent=1 // pred_fallthru
      _
    // Predicated region
    $region34: #{global_attention.1} parent=1 // pred_check
      _
    $region35: #{global_attention.1} parent=1 // pred_check_branch
      %433 = sbr.rel (0) target = $region37
    $region36: #{global_attention.1} parent=1 // pred_region
      %434 = dma.done [#allocation5], 32
    $region37: #{global_attention.1} parent=1 // pred_fallthru
      _
    %435 = vsyncpa [#allocation3], 1
    %436 = vsyncpa [#allocation5], 1

</llo_original>
